<compile_context>
chip_gen: v7x
topology: tpu7x:2x2x1
jax: 0.10.0
libtpu: 0.0.40
codegen_flags: <defaults>
</compile_context>

<pallas_src>
import jax
import jax.numpy as jnp
from jax.experimental import pallas as pl
from jax.experimental.pallas import tpu as pltpu


# ----------------------------------------------------------------------------
# Kernel
# ----------------------------------------------------------------------------
def _make_relu_sigmoid_kernel(compute_dtype):
    def kernel(x_ref, o_ref):
        x = x_ref[...]
        y = jnp.maximum(x, jnp.zeros_like(x))          # ReLU (VPU)
        yc = y.astype(compute_dtype)
        e = jnp.exp(-yc)                               # EUP; y >= 0 -> e in (0, 1]
        one = jnp.asarray(1.0, dtype=compute_dtype)
        o_ref[...] = (one / (one + e)).astype(o_ref.dtype)
    return kernel


# ----------------------------------------------------------------------------
# Tiling helpers
# ----------------------------------------------------------------------------
def _vmem_capacity_bytes() -> int:
    """Physical VMEM per TensorCore; conservative (v7x-sized) fallback."""
    try:
        info = pltpu.get_tpu_info()
        cap = getattr(info, "vmem_capacity_bytes", None)
        if cap:
            return int(cap)
    except Exception:
        pass
    return 64 * 1024 * 1024


def _choose_2d_view(total: int, natural_last: int):
    """Pick a zero-copy 2D view (rows, lanes) of the flat data.

    Prefer a wide lane dim (large multiple of 128) for unmasked, lane-dense
    stores; fall back to the array's natural trailing dim for ragged totals."""
    candidates = (4096, 2048, 1024, 512, 256, 128)
    for lanes in candidates:
        if total % lanes == 0 and total // lanes >= 8:
            return total // lanes, lanes
    for lanes in candidates:
        if total % lanes == 0:
            return total // lanes, lanes
    return total // natural_last, natural_last


def _pick_tiles(rows: int, lanes: int, itemsize: int, block_bytes: int, sublane: int):
    """Choose (tr, tl) so every block stays <= block_bytes and is layout-legal."""
    # Lane tile: full trailing dim if `sublane` rows of it fit in the budget
    # (or it is already narrow); otherwise chunk lanes in multiples of 128.
    max_lane_bytes = max(128 * itemsize, block_bytes // sublane)
    if lanes <= 128 or lanes * itemsize <= max_lane_bytes:
        tl = lanes
    else:
        tl = max(128, (max_lane_bytes // itemsize // 128) * 128)

    # Row tile: as many rows as fit, sublane-aligned unless it is the full dim.
    bytes_per_row = tl * itemsize
    tr_raw = max(1, block_bytes // bytes_per_row)
    if tr_raw >= rows:
        tr = rows                                      # full dim: always legal
    else:
        tr = max(sublane, (tr_raw // sublane) * sublane)
    return tr, tl


# ----------------------------------------------------------------------------
# Forward
# ----------------------------------------------------------------------------
def mynet_forward(x: jax.Array, *, donate: bool = False,
                  min_pallas_bytes: int = 256 * 1024) -> jax.Array:
    """Equivalent of MyNet.forward(x) == torch.sigmoid(torch.relu(x))."""
    orig_shape = x.shape
    dtype = x.dtype
    total = x.size
    if total == 0:
        return x

    itemsize = jnp.dtype(dtype).itemsize

    # Tiny inputs: fixed custom-call cost dominates; XLA fuses this in one pass.
    if total * itemsize < min_pallas_bytes:
        return jax.nn.sigmoid(jax.nn.relu(x))

    natural_last = orig_shape[-1] if x.ndim else 1
    rows, lanes = _choose_2d_view(total, natural_last)
    x2d = x.reshape(rows, lanes)                       # zero-copy view; no pad

    sublane = {4: 8, 2: 16, 1: 32}.get(itemsize, 8)    # dtype-aware sublane packing

    # Block budget derived from physical VMEM: pipeline footprint ~= 4x block
    # (in + out, double-buffered).  8 MiB blocks -> ~32 MiB pipeline, safe on
    # v7x's 64 MiB and comfortable on v5e/v6e's 128 MiB once the scoped limit
    # is raised explicitly below.
    vmem_cap = _vmem_capacity_bytes()
    block_bytes = int(min(8 * 1024 * 1024, max(1 * 1024 * 1024, vmem_cap // 8)))
    vmem_limit = int(min(vmem_cap - 8 * 1024 * 1024,
                         4 * block_bytes + 8 * 1024 * 1024))
    vmem_limit = max(vmem_limit, 16 * 1024 * 1024)

    tr, tl = _pick_tiles(rows, lanes, itemsize, block_bytes, sublane)
    grid = (pl.cdiv(rows, tr), pl.cdiv(lanes, tl))     # partial edge blocks masked

    # bf16 stays in bf16 on-chip (v6e/v7x have bf16 VPU/EUP; Mosaic upcasts on
    # v5e); everything else computes in f32 for accuracy.
    compute_dtype = jnp.bfloat16 if dtype == jnp.bfloat16 else jnp.float32
    kernel = _make_relu_sigmoid_kernel(compute_dtype)

    out2d = pl.pallas_call(
        kernel,
        out_shape=jax.ShapeDtypeStruct((rows, lanes), dtype),
        grid_spec=pl.GridSpec(
            grid=grid,
            in_specs=[pl.BlockSpec((tr, tl), lambda i, j: (i, j))],
            out_specs=pl.BlockSpec((tr, tl), lambda i, j: (i, j)),
        ),
        compiler_params=pltpu.CompilerParams(
            dimension_semantics=("parallel", "parallel"),
            vmem_limit_bytes=vmem_limit,
        ),
        input_output_aliases=({0: 0} if donate else {}),
    )(x2d)

    return out2d.reshape(orig_shape)


# ----------------------------------------------------------------------------
# Self-test
# ----------------------------------------------------------------------------
if __name__ == "__main__":
    # MyNet has no learnable parameters; forward is relu -> sigmoid.
    key = jax.random.PRNGKey(0)

    # 1) Canonical small test shape — force the Pallas path so the kernel runs.
    x = jax.random.normal(key, (2, 4, 16, 16), dtype=jnp.float32)
    out = jax.block_until_ready(mynet_forward(x, min_pallas_bytes=0))
    ref = jax.nn.sigmoid(jax.nn.relu(x))
    assert out.shape == x.shape and out.dtype == x.dtype
    assert float(jnp.max(jnp.abs(out - ref))) < 1e-6

    # 2) Larger input exercises the default auto-tiled (big-block) Pallas path.
    x_big = jax.random.normal(key, (8, 4, 64, 128), dtype=jnp.float32)  # 1 MiB
    out_big = jax.block_until_ready(mynet_forward(x_big))
    ref_big = jax.nn.sigmoid(jax.nn.relu(x_big))
    assert out_big.shape == x_big.shape and out_big.dtype == x_big.dtype
    assert float(jnp.max(jnp.abs(out_big - ref_big))) < 1e-6

    # 3) Tiny input takes the XLA fast path by default.
    out_small = jax.block_until_ready(mynet_forward(x))
    assert float(jnp.max(jnp.abs(out_small - ref))) < 1e-6

    print("KERNEL_OK")
</pallas_src>

<mosaic_0001>
module attributes {stable_mosaic.version = 11 : i64} {
  func.func @kernel(%arg0: i32, %arg1: i32, %arg2: memref<8x256xf32, #tpu.memory_space<vmem>>, %arg3: memref<8x256xf32, #tpu.memory_space<vmem>>) attributes {dimension_semantics = [#tpu.dimension_semantics<parallel>, #tpu.dimension_semantics<parallel>], iteration_bounds = array<i64: 1, 1>, scalar_prefetch = 0 : i64, scratch_operands = 0 : i64, tpu.core_type = #tpu.core_type<tc>, window_params = [{transform_indices = @transform_0, window_bounds = array<i64: 8, 256>}, {transform_indices = @transform_1, window_bounds = array<i64: 8, 256>}]} {
    %c0 = arith.constant 0 : index
    %c0_0 = arith.constant 0 : index
    %0 = vector.load %arg2[%c0, %c0_0] : memref<8x256xf32, #tpu.memory_space<vmem>>, vector<8x256xf32>
    %cst = arith.constant 0.000000e+00 : f32
    %1 = vector.broadcast %cst : f32 to vector<8x256xf32>
    %2 = arith.maximumf %0, %1 : vector<8x256xf32>
    %cst_1 = arith.constant 0.000000e+00 : f32
    %3 = vector.broadcast %cst_1 : f32 to vector<8x256xf32>
    %4 = arith.subf %3, %2 : vector<8x256xf32>
    %5 = math.exp %4 : vector<8x256xf32>
    %cst_2 = arith.constant 1.000000e+00 : f32
    %6 = vector.broadcast %cst_2 : f32 to vector<8x256xf32>
    %7 = arith.addf %6, %5 : vector<8x256xf32>
    %cst_3 = arith.constant 1.000000e+00 : f32
    %8 = vector.broadcast %cst_3 : f32 to vector<8x256xf32>
    %9 = arith.divf %8, %7 : vector<8x256xf32>
    %c0_4 = arith.constant 0 : index
    %c0_5 = arith.constant 0 : index
    %10 = vector.load %arg3[%c0_4, %c0_5] : memref<8x256xf32, #tpu.memory_space<vmem>>, vector<8x256xf32>
    tpu.vector_store %arg3[%c0_4, %c0_5], %9 {strides = array<i32>} : memref<8x256xf32, #tpu.memory_space<vmem>>, vector<8x256xf32>,
    return
  }
  func.func @transform_0(%arg0: i32, %arg1: i32) -> (i32, i32) {
    %c0_i32 = arith.constant 0 : i32
    return %arg0, %arg1 : i32, i32
  }
  func.func @transform_1(%arg0: i32, %arg1: i32) -> (i32, i32) {
    %c0_i32 = arith.constant 0 : i32
    return %arg0, %arg1 : i32, i32
  }
}

</mosaic_0001>

<llo_original>
// kernel: tpu_custom_call.1
$region0: #{tpu_custom_call.1}
  #allocation0 [shape = 'u32[]', space=smem, size = 0x4, offset = 0x4, fixed_abs, tag = 'smem constant byte address 0x4 - core index']
  #allocation1 [shape = 'u32[144,128]{1,0:T(1,128)}', space=vmem, size = 0x12000, scoped, tag = 'internal scratch']
  %s0 = inlined_call_operand.hbm [shape: f32[8,256], index: 0, kind: input, shape index: {}]
  %s1 = inlined_call_operand.hbm [shape: f32[8,256], index: 1, kind: output, shape index: {}]
  %s2 = sld [smem:[#allocation0]]
  $region18: #{tpu_custom_call.1} parent=0
    _
  %s4 = ssub.s32 1, %s2
  %s5 = scalar_select 0, %s4, %s2
  $region1: #{tpu_custom_call.1} parent=0
    #allocation2 [shape = 'u8[8192]{0}', space=vmem, size = 0x2000, scoped, tag = 'input window, operand 0, single buffered']
    #allocation3 [shape = 's32[1]{0}', space=sflag, size = 0x4, scoped, tag = 'scoped memory for tpu_custom_call.1']
    #allocation4 [shape = 's32[1]{0}', space=sflag, size = 0x4, scoped, tag = 'scoped memory for tpu_custom_call.1']
    #allocation5 [shape = 'u8[8192]{0}', space=vmem, size = 0x2000, scoped, tag = 'output window, operand 0, single buffered']
    %6 = vsyncpa [#allocation3], 0
    %7 = vsyncpa [#allocation4], 0
    // Predicated region
    $region2: #{tpu_custom_call.1} parent=1 // pred_check
      _
    $region3: #{tpu_custom_call.1} parent=1 // pred_check_branch
      %9 = sbr.rel (0) target = $region5
    $region4: #{tpu_custom_call.1} parent=1 // pred_region
      %s11 = ssub.s32 256, 256
      %12 = vsyncadd [#allocation3], %s11
      %s14 = sshll.u32 [#allocation2], 4
      %s15 = int_to_ptr.vmem [resolvable:$true] %s14
      %17 = dma.hbm_to_vmem [thread:$0]  %s0, 256, %s15, [#allocation3]
    $region5: #{tpu_custom_call.1} parent=1 // pred_fallthru
      _
    // Predicated region
    $region6: #{tpu_custom_call.1} parent=1 // pred_check
      _
    $region7: #{tpu_custom_call.1} parent=1 // pred_check_branch
      %19 = sbr.rel (0) target = $region9
    $region8: #{tpu_custom_call.1} parent=1 // pred_region
      %20 = dma.done [#allocation3], 256
    $region9: #{tpu_custom_call.1} parent=1 // pred_fallthru
      _
    %v21 = vld [vmem:[#allocation2] sm:$0xff]
    %v22 = vld [vmem:[#allocation2 + $0x8] sm:$0xff]
    %v23 = vmax.f32 %v21, 0.0
    %v24 = vmax.f32 %v22, 0.0
    %v25 = vsub.f32 0.0, %v23
    %v26 = vsub.f32 0.0, %v24
    %v27 = vmul.f32 %v25, 1.442695
    %v28 = vpow.pop %v27
    %v29 = vmul.f32 %v26, 1.442695
    %v30 = vpow.pop %v29
    %v31 = vadd.f32 %v28, 1.0
    %v32 = vadd.f32 %v30, 1.0
    %v33 = vrcp.pop %v31
    %v34 = vmul.f32 1.0, %v33
    %v35 = vrcp.pop %v32
    %v36 = vmul.f32 1.0, %v35
    %37 = vst [vmem:[#allocation5] sm:$0xff] %v34
    %38 = vst [vmem:[#allocation5 + $0x8] sm:$0xff] %v36
    // Predicated region
    $region10: #{tpu_custom_call.1} parent=1 // pred_check
      _
    $region11: #{tpu_custom_call.1} parent=1 // pred_check_branch
      %40 = sbr.rel (0) target = $region13
    $region12: #{tpu_custom_call.1} parent=1 // pred_region
      %s42 = ssub.s32 256, 256
      %43 = vsyncadd [#allocation4], %s42
      %s45 = sshll.u32 [#allocation5], 4
      %s46 = int_to_ptr.vmem [resolvable:$true] %s45
      %48 = dma.vmem_to_hbm [thread:$0]  %s46, 256, %s1, [#allocation4]
    $region13: #{tpu_custom_call.1} parent=1 // pred_fallthru
      _
    // Predicated region
    $region14: #{tpu_custom_call.1} parent=1 // pred_check
      _
    $region15: #{tpu_custom_call.1} parent=1 // pred_check_branch
      %50 = sbr.rel (0) target = $region17
    $region16: #{tpu_custom_call.1} parent=1 // pred_region
      %51 = dma.done [#allocation4], 256
    $region17: #{tpu_custom_call.1} parent=1 // pred_fallthru
      _
    %52 = vsyncpa [#allocation3], 1
    %53 = vsyncpa [#allocation4], 1

</llo_original>
